<compile_context>
chip_gen: v7x
topology: tpu7x:2x2x1
jax: 0.10.0
libtpu: 0.0.40
codegen_flags: <defaults>
</compile_context>

<pallas_src>
import jax
import jax.numpy as jnp
from jax.experimental import pallas as pl
from jax.experimental.pallas import tpu as pltpu


_LANES = 128                    # full vreg lane width -> unmasked loads/stores
_ROW_ALIGN = 32                 # covers f32 (8), bf16 (16), int8 (32) sublane packing
_TARGET_BLOCK_BYTES = 1 << 20   # ~1 MiB per live buffer
_PALLAS_MIN_BYTES = 256 << 10   # below this, let XLA fuse the add


def _qadd_kernel(xl_ref, xr_ref, o_ref):
    # Pure VPU elementwise add on the current VMEM tile; the kernel is
    # HBM-bandwidth bound, so the VALU has large slack here.
    # TODO(synk): if QAdd's input/output fake-quant (scale/round/clamp/dequant)
    # is enabled by the surrounding QuantModel config, fuse it into this body
    # to remove extra full-tensor HBM passes.
    o_ref[...] = xl_ref[...] + xr_ref[...]


def qadd(x_left: jax.Array, x_right: jax.Array, *, force_pallas: bool = False) -> jax.Array:
    """Elementwise add of two same-shaped tensors (NCHW or any layout)."""
    assert x_left.shape == x_right.shape, "QAdd kernel expects equal shapes"
    assert x_left.dtype == x_right.dtype, "QAdd kernel expects equal dtypes"

    orig_shape = x_left.shape
    dtype = x_left.dtype
    itemsize = jnp.dtype(dtype).itemsize

    total = 1
    for d in orig_shape:
        total *= d
    total_bytes = total * itemsize

    # Tiny tensors: kernel dispatch + pipeline prologue dominates; plain XLA add
    # is strictly faster and fusable with neighbors.
    if total_bytes < _PALLAS_MIN_BYTES and not force_pallas:
        return x_left + x_right

    # Flatten and pad to a multiple of 128 lanes * 32 sublanes so the 2D slab is
    # lane-dense and legally tileable for any supported dtype.
    chunk = _LANES * _ROW_ALIGN
    pad = (-total) % chunk

    xl_flat = x_left.reshape(-1)
    xr_flat = x_right.reshape(-1)
    if pad:
        xl_flat = jnp.pad(xl_flat, (0, pad))
        xr_flat = jnp.pad(xr_flat, (0, pad))

    padded = total + pad
    rows = padded // _LANES           # guaranteed multiple of _ROW_ALIGN (32)
    cols = _LANES

    xl2 = xl_flat.reshape(rows, cols)
    xr2 = xr_flat.reshape(rows, cols)

    # ~1 MiB per buffer, block_rows a multiple of 32.
    block_rows = (_TARGET_BLOCK_BYTES // (cols * itemsize) // _ROW_ALIGN) * _ROW_ALIGN
    block_rows = max(block_rows, _ROW_ALIGN)

    # Encourage >= 2 grid steps when the slab is big enough (keeps both v7x
    # TensorCores busy via the "parallel" grid axis).
    half_rows = ((rows + 1) // 2 + _ROW_ALIGN - 1) // _ROW_ALIGN * _ROW_ALIGN
    block_rows = min(block_rows, max(half_rows, _ROW_ALIGN))
    block_rows = min(block_rows, rows)

    grid = (pl.cdiv(rows, block_rows),)   # ragged last block handled by Pallas

    out2 = pl.pallas_call(
        _qadd_kernel,
        out_shape=jax.ShapeDtypeStruct((rows, cols), dtype),
        grid=grid,
        in_specs=[
            pl.BlockSpec((block_rows, cols), lambda i: (i, 0)),
            pl.BlockSpec((block_rows, cols), lambda i: (i, 0)),
        ],
        out_specs=pl.BlockSpec((block_rows, cols), lambda i: (i, 0)),
        compiler_params=pltpu.CompilerParams(
            dimension_semantics=("parallel",),
        ),
    )(xl2, xr2)

    if pad:
        return out2.reshape(-1)[:total].reshape(orig_shape)
    return out2.reshape(orig_shape)


if __name__ == "__main__":
    key = jax.random.PRNGKey(0)
    k1, k2, k3, k4, k5, k6 = jax.random.split(key, 6)

    # 1) Small NCHW shape matching the PyTorch module convention; force the
    #    Pallas path so the kernel itself is exercised.
    shape_small = (2, 4, 16, 16)
    xl_s = jax.random.normal(k1, shape_small, dtype=jnp.float32)
    xr_s = jax.random.normal(k2, shape_small, dtype=jnp.float32)
    out_s = jax.block_until_ready(qadd(xl_s, xr_s, force_pallas=True))
    ref_s = xl_s + xr_s
    assert out_s.shape == ref_s.shape and out_s.dtype == ref_s.dtype
    assert jnp.allclose(out_s, ref_s, atol=1e-6, rtol=1e-6)

    # 2) Odd, non-128-divisible shape to exercise the pad/slice path.
    shape_odd = (2, 3, 17, 19)
    xl_o = jax.random.normal(k3, shape_odd, dtype=jnp.float32)
    xr_o = jax.random.normal(k4, shape_odd, dtype=jnp.float32)
    out_o = jax.block_until_ready(qadd(xl_o, xr_o, force_pallas=True))
    ref_o = xl_o + xr_o
    assert jnp.allclose(out_o, ref_o, atol=1e-6, rtol=1e-6)

    # 3) Moderate shape above the bypass threshold -> default Pallas path with
    #    a multi-step grid (megacore-friendly).
    shape_med = (8, 32, 32, 32)
    xl_m = jax.random.normal(k5, shape_med, dtype=jnp.float32)
    xr_m = jax.random.normal(k6, shape_med, dtype=jnp.float32)
    out_m = jax.block_until_ready(qadd(xl_m, xr_m))
    ref_m = xl_m + xr_m
    assert jnp.allclose(out_m, ref_m, atol=1e-6, rtol=1e-6)

    print("KERNEL_OK")
</pallas_src>

<mosaic_0001>
module attributes {stable_mosaic.version = 11 : i64} {
  func.func @_qadd_kernel(%arg0: i32, %arg1: memref<32x128xf32, #tpu.memory_space<vmem>>, %arg2: memref<32x128xf32, #tpu.memory_space<vmem>>, %arg3: memref<32x128xf32, #tpu.memory_space<vmem>>) attributes {dimension_semantics = [#tpu.dimension_semantics<parallel>], iteration_bounds = array<i64: 1>, scalar_prefetch = 0 : i64, scratch_operands = 0 : i64, tpu.core_type = #tpu.core_type<tc>, window_params = [{transform_indices = @transform_0, window_bounds = array<i64: 32, 128>}, {transform_indices = @transform_1, window_bounds = array<i64: 32, 128>}, {transform_indices = @transform_2, window_bounds = array<i64: 32, 128>}]} {
    %c0 = arith.constant 0 : index
    %c0_0 = arith.constant 0 : index
    %0 = vector.load %arg1[%c0, %c0_0] : memref<32x128xf32, #tpu.memory_space<vmem>>, vector<32x128xf32>
    %c0_1 = arith.constant 0 : index
    %c0_2 = arith.constant 0 : index
    %1 = vector.load %arg2[%c0_1, %c0_2] : memref<32x128xf32, #tpu.memory_space<vmem>>, vector<32x128xf32>
    %2 = arith.addf %0, %1 : vector<32x128xf32>
    %c0_3 = arith.constant 0 : index
    %c0_4 = arith.constant 0 : index
    %3 = vector.load %arg3[%c0_3, %c0_4] : memref<32x128xf32, #tpu.memory_space<vmem>>, vector<32x128xf32>
    tpu.vector_store %arg3[%c0_3, %c0_4], %2 {strides = array<i32>} : memref<32x128xf32, #tpu.memory_space<vmem>>, vector<32x128xf32>,
    return
  }
  func.func @transform_0(%arg0: i32) -> (i32, i32) {
    %c0_i32 = arith.constant 0 : i32
    %c0_i32_0 = arith.constant 0 : i32
    return %arg0, %c0_i32 : i32, i32
  }
  func.func @transform_1(%arg0: i32) -> (i32, i32) {
    %c0_i32 = arith.constant 0 : i32
    %c0_i32_0 = arith.constant 0 : i32
    return %arg0, %c0_i32 : i32, i32
  }
  func.func @transform_2(%arg0: i32) -> (i32, i32) {
    %c0_i32 = arith.constant 0 : i32
    %c0_i32_0 = arith.constant 0 : i32
    return %arg0, %c0_i32 : i32, i32
  }
}

</mosaic_0001>

<llo_original>
// kernel: tpu_custom_call.1
$region0: #{tpu_custom_call.1}
  #allocation0 [shape = 'u32[]', space=smem, size = 0x4, offset = 0x4, fixed_abs, tag = 'smem constant byte address 0x4 - core index']
  #allocation1 [shape = 'u32[144,128]{1,0:T(1,128)}', space=vmem, size = 0x12000, scoped, tag = 'internal scratch']
  %s0 = inlined_call_operand.hbm [shape: f32[32,128], index: 0, kind: input, shape index: {}]
  %s1 = inlined_call_operand.hbm [shape: f32[32,128], index: 1, kind: input, shape index: {}]
  %s2 = inlined_call_operand.hbm [shape: f32[32,128], index: 2, kind: output, shape index: {}]
  %s3 = sld [smem:[#allocation0]]
  $region26: #{tpu_custom_call.1} parent=0
    _
  %s5 = ssub.s32 1, %s3
  %s6 = scalar_select 0, %s5, %s3
  $region1: #{tpu_custom_call.1} parent=0
    #allocation2 [shape = 'u8[16384]{0}', space=vmem, size = 0x4000, scoped, tag = 'input window, operand 0, single buffered']
    #allocation3 [shape = 's32[1]{0}', space=sflag, size = 0x4, scoped, tag = 'scoped memory for tpu_custom_call.1']
    #allocation4 [shape = 's32[1]{0}', space=sflag, size = 0x4, scoped, tag = 'scoped memory for tpu_custom_call.1']
    #allocation5 [shape = 'u8[16384]{0}', space=vmem, size = 0x4000, scoped, tag = 'input window, operand 1, single buffered']
    #allocation6 [shape = 's32[1]{0}', space=sflag, size = 0x4, scoped, tag = 'scoped memory for tpu_custom_call.1']
    #allocation7 [shape = 'u8[16384]{0}', space=vmem, size = 0x4000, scoped, tag = 'output window, operand 0, single buffered']
    %7 = vsyncpa [#allocation3], 0
    %8 = vsyncpa [#allocation6], 0
    %9 = vsyncpa [#allocation4], 0
    // Predicated region
    $region2: #{tpu_custom_call.1} parent=1 // pred_check
      _
    $region3: #{tpu_custom_call.1} parent=1 // pred_check_branch
      %11 = sbr.rel (0) target = $region5
    $region4: #{tpu_custom_call.1} parent=1 // pred_region
      %s13 = ssub.s32 512, 512
      %14 = vsyncadd [#allocation3], %s13
      %s15 = sshll.u32 [#allocation2], 4
      %s16 = int_to_ptr.vmem [resolvable:$true] %s15
      %21 = dma.hbm_to_vmem [thread:$0]  %s0, 512, %s16, [#allocation3], 128, 128, 8
    $region5: #{tpu_custom_call.1} parent=1 // pred_fallthru
      _
    // Predicated region
    $region6: #{tpu_custom_call.1} parent=1 // pred_check
      _
    $region7: #{tpu_custom_call.1} parent=1 // pred_check_branch
      %23 = sbr.rel (0) target = $region9
    $region8: #{tpu_custom_call.1} parent=1 // pred_region
      %s25 = ssub.s32 512, 512
      %26 = vsyncadd [#allocation6], %s25
      %s27 = sshll.u32 [#allocation5], 4
      %s28 = int_to_ptr.vmem [resolvable:$true] %s27
      %33 = dma.hbm_to_vmem [thread:$0]  %s1, 512, %s28, [#allocation6], 128, 128, 8
    $region9: #{tpu_custom_call.1} parent=1 // pred_fallthru
      _
    // Predicated region
    $region10: #{tpu_custom_call.1} parent=1 // pred_check
      _
    $region11: #{tpu_custom_call.1} parent=1 // pred_check_branch
      %35 = sbr.rel (0) target = $region13
    $region12: #{tpu_custom_call.1} parent=1 // pred_region
      %36 = dma.done [#allocation3], 512
    $region13: #{tpu_custom_call.1} parent=1 // pred_fallthru
      _
    // Predicated region
    $region14: #{tpu_custom_call.1} parent=1 // pred_check
      _
    $region15: #{tpu_custom_call.1} parent=1 // pred_check_branch
      %38 = sbr.rel (0) target = $region17
    $region16: #{tpu_custom_call.1} parent=1 // pred_region
      %39 = dma.done [#allocation6], 512
    $region17: #{tpu_custom_call.1} parent=1 // pred_fallthru
      _
    %v40 = vld [vmem:[#allocation2] sm:$0xff]
    %v41 = vld [vmem:[#allocation2 + $0x8] sm:$0xff]
    %v42 = vld [vmem:[#allocation2 + $0x10] sm:$0xff]
    %v43 = vld [vmem:[#allocation2 + $0x18] sm:$0xff]
    %v44 = vld [vmem:[#allocation5] sm:$0xff]
    %v45 = vld [vmem:[#allocation5 + $0x8] sm:$0xff]
    %v46 = vld [vmem:[#allocation5 + $0x10] sm:$0xff]
    %v47 = vld [vmem:[#allocation5 + $0x18] sm:$0xff]
    %v48 = vadd.f32 %v40, %v44
    %v49 = vadd.f32 %v41, %v45
    %v50 = vadd.f32 %v42, %v46
    %v51 = vadd.f32 %v43, %v47
    %52 = vst [vmem:[#allocation7] sm:$0xff] %v48
    %53 = vst [vmem:[#allocation7 + $0x8] sm:$0xff] %v49
    %54 = vst [vmem:[#allocation7 + $0x10] sm:$0xff] %v50
    %55 = vst [vmem:[#allocation7 + $0x18] sm:$0xff] %v51
    // Predicated region
    $region18: #{tpu_custom_call.1} parent=1 // pred_check
      _
    $region19: #{tpu_custom_call.1} parent=1 // pred_check_branch
      %57 = sbr.rel (0) target = $region21
    $region20: #{tpu_custom_call.1} parent=1 // pred_region
      %s59 = ssub.s32 512, 512
      %60 = vsyncadd [#allocation4], %s59
      %s61 = sshll.u32 [#allocation7], 4
      %s62 = int_to_ptr.vmem [resolvable:$true] %s61
      %67 = dma.vmem_to_hbm [thread:$0]  %s62, 512, %s2, [#allocation4], 128, 128, 8
    $region21: #{tpu_custom_call.1} parent=1 // pred_fallthru
      _
    // Predicated region
    $region22: #{tpu_custom_call.1} parent=1 // pred_check
      _
    $region23: #{tpu_custom_call.1} parent=1 // pred_check_branch
      %69 = sbr.rel (0) target = $region25
    $region24: #{tpu_custom_call.1} parent=1 // pred_region
      %70 = dma.done [#allocation4], 512
    $region25: #{tpu_custom_call.1} parent=1 // pred_fallthru
      _
    %71 = vsyncpa [#allocation3], 1
    %72 = vsyncpa [#allocation6], 1
    %73 = vsyncpa [#allocation4], 1

</llo_original>
